<compile_context>
chip_gen: v7x
topology: tpu7x:2x2x1
jax: 0.10.0
libtpu: 0.0.40
codegen_flags: <defaults>
</compile_context>

<pallas_src>
import functools

import jax
import jax.numpy as jnp
from jax import lax
from jax.experimental import pallas as pl
from jax.experimental.pallas import tpu as pltpu


_TARGET_BLOCK_BYTES = 4 * 1024 * 1024       # stream-tile cap (per block)
_FUSED_SLAB_LIMIT_BYTES = 6 * 1024 * 1024   # residency gate (v7x-safe)
_VMEM_LIMIT_BYTES = 32 * 1024 * 1024        # explicit scoped-VMEM limit


# --------------------------------------------------------------------------
# Path 1: fused-resident single kernel (manual DMA, slab resident in VMEM)
# --------------------------------------------------------------------------
def _fused_kernel(x_hbm, w_ref, b_ref, o_hbm, slab, sems, *, inv_hw):
    b = pl.program_id(0)

    # Stream this batch element's (C, HW) slab into VMEM.
    cp_in = pltpu.make_async_copy(x_hbm.at[b], slab, sems.at[0])
    cp_in.start()
    cp_in.wait()

    # Global average pool: per-channel lane reduce, accumulated in f32.
    mean = jnp.sum(slab[...], axis=1, keepdims=True, dtype=jnp.float32) * inv_hw  # (C,1)

    # 1x1 conv (matvec on the idle MXU) + bias + hard sigmoid, all f32.
    y = jnp.dot(w_ref[...].astype(jnp.float32), mean,
                preferred_element_type=jnp.float32)            # (C_out, 1)
    y = y + b_ref[...]
    s = jnp.clip(y + 3.0, 0.0, 6.0) * (1.0 / 6.0)              # (C, 1) in [0,1]

    # Gate the resident slab in place (input dtype), then stream it out.
    slab[...] = slab[...] * s.astype(slab.dtype)
    cp_out = pltpu.make_async_copy(slab, o_hbm.at[b], sems.at[1])
    cp_out.start()
    cp_out.wait()


def _ese_fused(x, w, b2):
    B, C, HW = x.shape
    return pl.pallas_call(
        functools.partial(_fused_kernel, inv_hw=1.0 / HW),
        out_shape=jax.ShapeDtypeStruct((B, C, HW), x.dtype),
        grid_spec=pltpu.PrefetchScalarGridSpec(
            num_scalar_prefetch=0,
            grid=(B,),
            in_specs=[pl.BlockSpec(memory_space=pl.ANY),          # x (HBM)
                      pl.BlockSpec((C, C), lambda b: (0, 0)),     # weight
                      pl.BlockSpec((C, 1), lambda b: (0, 0))],    # bias (f32)
            out_specs=pl.BlockSpec(memory_space=pl.ANY),          # out (HBM)
            scratch_shapes=[pltpu.VMEM((C, HW), x.dtype),
                            pltpu.SemaphoreType.DMA((2,))]),
        compiler_params=pltpu.CompilerParams(
            dimension_semantics=("parallel",),
            vmem_limit_bytes=_VMEM_LIMIT_BYTES),
    )(x, w, b2)


# --------------------------------------------------------------------------
# Path 2: streamed 2-pass fallback (pool+scale fused, then gate)
# --------------------------------------------------------------------------
def _pool_scale_kernel(x_ref, w_ref, b_ref, s_ref, acc_ref,
                       *, hw_total, hw_tile, masked):
    # x_ref : (1, C, hw_tile) one batch element, one spatial tile
    # s_ref : (1, C, 1) f32   gating scale (written on the last tile only)
    # acc_ref: (C, 1) f32     spatial-sum accumulator across the t axis
    t = pl.program_id(1)

    @pl.when(t == 0)
    def _():
        acc_ref[...] = jnp.zeros_like(acc_ref)

    x = x_ref[0]                                           # (C, hw_tile)
    if masked:
        # cdiv grid: the tail tile's out-of-range lanes hold garbage -> mask.
        col = lax.broadcasted_iota(jnp.int32, x.shape, 1)
        rem = hw_total - t * hw_tile
        x = jnp.where(col < rem, x, jnp.zeros_like(x))
    acc_ref[...] += jnp.sum(x, axis=1, keepdims=True, dtype=jnp.float32)

    @pl.when(t == pl.num_programs(1) - 1)
    def _():
        # Fused tail: tiny 1x1 conv + bias + hard sigmoid (free MXU/VPU slots).
        mean = acc_ref[...] * (1.0 / hw_total)             # (C, 1) f32
        y = jnp.dot(w_ref[...].astype(jnp.float32), mean,
                    preferred_element_type=jnp.float32)
        y = y + b_ref[...]
        s_ref[0] = jnp.clip(y + 3.0, 0.0, 6.0) * (1.0 / 6.0)


def _gate_kernel(x_ref, s_ref, o_ref):
    # x_ref: (1, C, hw_tile); s_ref: (1, C, 1) f32; o_ref: (1, C, hw_tile)
    # scale broadcasts along the lane (spatial) axis; gate in the input dtype
    o_ref[...] = x_ref[...] * s_ref[...].astype(o_ref.dtype)


def _pick_hw_tile(hw, c, itemsize):
    """Lane-aligned streaming tile: multiple of 128, <= HW, per-block bytes
    capped so double-buffered in+out stays comfortably inside the scoped VMEM
    limit on every TPU generation."""
    if hw < 128:
        return hw                                  # full extent (always legal)
    max_cols = max(128, ((_TARGET_BLOCK_BYTES // max(1, c * itemsize)) // 128) * 128)
    base = (hw // 128) * 128                       # largest multiple of 128 <= hw
    return max(128, min(max_cols, base))


def _ese_streamed(x, w, b2):
    B, C, HW = x.shape
    hw_tile = _pick_hw_tile(HW, C, x.dtype.itemsize)
    n_t = pl.cdiv(HW, hw_tile)
    masked = (HW % hw_tile) != 0

    # ---- pass A: pooled mean + 1x1 conv + hard sigmoid -> per-batch scale --
    scale = pl.pallas_call(
        functools.partial(_pool_scale_kernel,
                          hw_total=HW, hw_tile=hw_tile, masked=masked),
        out_shape=jax.ShapeDtypeStruct((B, C, 1), jnp.float32),
        grid_spec=pltpu.PrefetchScalarGridSpec(
            num_scalar_prefetch=0,
            grid=(B, n_t),
            in_specs=[pl.BlockSpec((1, C, hw_tile), lambda b, t: (b, 0, t)),
                      pl.BlockSpec((C, C), lambda b, t: (0, 0)),
                      pl.BlockSpec((C, 1), lambda b, t: (0, 0))],
            out_specs=pl.BlockSpec((1, C, 1), lambda b, t: (b, 0, 0)),
            scratch_shapes=[pltpu.VMEM((C, 1), jnp.float32)]),
        compiler_params=pltpu.CompilerParams(
            dimension_semantics=("parallel", "arbitrary"),
            vmem_limit_bytes=_VMEM_LIMIT_BYTES),
    )(x, w, b2)

    # ---- pass B: channel-wise gating, HW-tiled --------------------------
    out = pl.pallas_call(
        _gate_kernel,
        out_shape=jax.ShapeDtypeStruct((B, C, HW), x.dtype),
        grid_spec=pltpu.PrefetchScalarGridSpec(
            num_scalar_prefetch=0,
            grid=(B, n_t),
            in_specs=[pl.BlockSpec((1, C, hw_tile), lambda b, t: (b, 0, t)),
                      pl.BlockSpec((1, C, 1), lambda b, t: (b, 0, 0))],
            out_specs=pl.BlockSpec((1, C, hw_tile), lambda b, t: (b, 0, t)),
        ),
        compiler_params=pltpu.CompilerParams(
            dimension_semantics=("parallel", "parallel"),
            vmem_limit_bytes=_VMEM_LIMIT_BYTES),
    )(x, scale)
    return out


# --------------------------------------------------------------------------
# Public entry point
# --------------------------------------------------------------------------
def ese_module(x_nchw, weight, bias, *, force_streamed=False):
    """x_nchw: [B, C, H, W]; weight: [C_out, C_in, 1, 1]; bias: [C_out]."""
    B, C, H, W = x_nchw.shape
    HW = H * W

    x = x_nchw.reshape(B, C, HW)                      # free view, no HBM move
    w = weight.reshape(C, C).astype(x.dtype)          # (C_out, C_in), input dtype
    b2 = bias.reshape(C, 1).astype(jnp.float32)

    slab_bytes = C * HW * x.dtype.itemsize
    if (not force_streamed) and slab_bytes <= _FUSED_SLAB_LIMIT_BYTES:
        out = _ese_fused(x, w, b2)
    else:
        out = _ese_streamed(x, w, b2)
    return out.reshape(B, C, H, W)


def _reference(x_nchw, weight, bias):
    # pure-JAX reference with identical semantics (sanity check)
    s = jnp.mean(x_nchw, axis=(2, 3), keepdims=True)                   # [B,C,1,1]
    s = jnp.einsum('bchw,oc->bohw', s, weight.reshape(weight.shape[0], -1))
    s = s + bias.reshape(1, -1, 1, 1)
    s = jnp.clip(s + 3.0, 0.0, 6.0) / 6.0
    return x_nchw * s


if __name__ == "__main__":
    key = jax.random.PRNGKey(0)

    def make_case(k, B, C, H, W):
        kx, kw, kb = jax.random.split(k, 3)
        x = jax.random.normal(kx, (B, C, H, W), dtype=jnp.float32)
        # deterministic synthetic Conv2d(C, C, kernel_size=1) parameters
        w = jax.random.normal(kw, (C, C, 1, 1), dtype=jnp.float32) * 0.1
        b = jax.random.normal(kb, (C,), dtype=jnp.float32) * 0.1
        return x, w, b

    cases = [
        ((2, 4, 16, 16), False),   # fused-resident path, lane-aligned HW
        ((2, 4, 16, 16), True),    # streamed path, single full-extent tile
        ((2, 16, 14, 14), False),  # fused-resident path, HW=196 (not %128)
        ((2, 16, 14, 14), True),   # streamed path, masked tail tile
    ]
    keys = jax.random.split(key, len(cases))
    for k, ((B, C, H, W), force_streamed) in zip(keys, cases):
        x, w, b = make_case(k, B, C, H, W)
        out = ese_module(x, w, b, force_streamed=force_streamed)
        out = jax.block_until_ready(out)
        ref = _reference(x, w, b)
        assert out.shape == (B, C, H, W)
        assert jnp.allclose(out, ref, atol=1e-5, rtol=1e-5), (
            (B, C, H, W), force_streamed, float(jnp.max(jnp.abs(out - ref))))

    print("KERNEL_OK")
</pallas_src>

<mosaic_0001>
module attributes {stable_mosaic.version = 11 : i64} {
  func.func @_fused_kernel(%arg0: i32, %arg1: memref<2x4x256xf32, #tpu.memory_space<any>>, %arg2: memref<4x4xf32, #tpu.memory_space<vmem>>, %arg3: memref<4x1xf32, #tpu.memory_space<vmem>>, %arg4: memref<2x4x256xf32, #tpu.memory_space<any>>, %arg5: memref<4x256xf32, #tpu.memory_space<vmem>>, %arg6: memref<2x!tpu.dma_semaphore, #tpu.memory_space<semaphore_mem>>) attributes {dimension_semantics = [#tpu.dimension_semantics<parallel>], iteration_bounds = array<i64: 2>, scalar_prefetch = 0 : i64, scratch_operands = 2 : i64, tpu.core_type = #tpu.core_type<tc>, window_params = [{}, {pipeline_mode = #tpu.pipeline_mode<synchronous>, transform_indices = @transform_1, window_bounds = array<i64: 4, 4>}, {pipeline_mode = #tpu.pipeline_mode<synchronous>, transform_indices = @transform_2, window_bounds = array<i64: 4, 1>}, {}]} {
    %c0_i32 = arith.constant 0 : i32
    %c0_i32_0 = arith.constant 0 : i32
    %c0_i32_1 = arith.constant 0 : i32
    %0 = tpu.memref_slice %arg1[%arg0, %c0_i32_0, %c0_i32_1] : memref<2x4x256xf32, #tpu.memory_space<any>> -> memref<1x4x256xf32, #tpu.memory_space<any>>
    %1 = tpu.memref_squeeze %0 : memref<1x4x256xf32, #tpu.memory_space<any>> -> memref<4x256xf32, #tpu.memory_space<any>>
    %2 = tpu.memref_slice %arg6[%c0_i32] : memref<2x!tpu.dma_semaphore, #tpu.memory_space<semaphore_mem>> -> memref<1x!tpu.dma_semaphore, #tpu.memory_space<semaphore_mem>>
    %3 = tpu.memref_squeeze %2 : memref<1x!tpu.dma_semaphore, #tpu.memory_space<semaphore_mem>> -> memref<!tpu.dma_semaphore, #tpu.memory_space<semaphore_mem>>
    tpu.enqueue_dma source(%1 : memref<4x256xf32, #tpu.memory_space<any>>) target(%arg5 : memref<4x256xf32, #tpu.memory_space<vmem>>) target_semaphore(%3 : memref<!tpu.dma_semaphore, #tpu.memory_space<semaphore_mem>>)
    %c0_i32_2 = arith.constant 0 : i32
    %c0_i32_3 = arith.constant 0 : i32
    %c0_i32_4 = arith.constant 0 : i32
    %4 = tpu.memref_slice %arg1[%arg0, %c0_i32_3, %c0_i32_4] : memref<2x4x256xf32, #tpu.memory_space<any>> -> memref<1x4x256xf32, #tpu.memory_space<any>>
    %5 = tpu.memref_squeeze %4 : memref<1x4x256xf32, #tpu.memory_space<any>> -> memref<4x256xf32, #tpu.memory_space<any>>
    %6 = tpu.memref_slice %arg6[%c0_i32_2] : memref<2x!tpu.dma_semaphore, #tpu.memory_space<semaphore_mem>> -> memref<1x!tpu.dma_semaphore, #tpu.memory_space<semaphore_mem>>
    %7 = tpu.memref_squeeze %6 : memref<1x!tpu.dma_semaphore, #tpu.memory_space<semaphore_mem>> -> memref<!tpu.dma_semaphore, #tpu.memory_space<semaphore_mem>>
    tpu.wait_dma2 semaphore(%7 : memref<!tpu.dma_semaphore, #tpu.memory_space<semaphore_mem>>) src(%5 : memref<4x256xf32, #tpu.memory_space<any>>) dst(%arg5 : memref<4x256xf32, #tpu.memory_space<vmem>>)
    %c0 = arith.constant 0 : index
    %c0_5 = arith.constant 0 : index
    %8 = vector.load %arg5[%c0, %c0_5] : memref<4x256xf32, #tpu.memory_space<vmem>>, vector<4x256xf32>
    %cst = arith.constant dense<0.000000e+00> : vector<4xf32>
    %9 = vector.multi_reduction <add>, %8, %cst [1] : vector<4x256xf32> to vector<4xf32>
    %10 = vector.shape_cast %9 : vector<4xf32> to vector<4x1xf32>
    %cst_6 = arith.constant 3.906250e-03 : f32
    %11 = vector.broadcast %cst_6 : f32 to vector<4x1xf32>
    %12 = arith.mulf %10, %11 : vector<4x1xf32>
    %c0_7 = arith.constant 0 : index
    %c0_8 = arith.constant 0 : index
    %13 = vector.load %arg2[%c0_7, %c0_8] : memref<4x4xf32, #tpu.memory_space<vmem>>, vector<4x4xf32>
    %cst_9 = arith.constant dense<0.000000e+00> : vector<4x1xf32>
    %14 = tpu.matmul %13, %12, %cst_9 {dimension_numbers = #tpu.dot_dimension_numbers<[1], [0], [0], [1], [0, 0, 1, 1], [], []>} : vector<4x4xf32>, vector<4x1xf32>, vector<4x1xf32> -> vector<4x1xf32>
    %c0_10 = arith.constant 0 : index
    %c0_11 = arith.constant 0 : index
    %15 = vector.load %arg3[%c0_10, %c0_11] : memref<4x1xf32, #tpu.memory_space<vmem>>, vector<4x1xf32>
    %16 = arith.addf %14, %15 : vector<4x1xf32>
    %cst_12 = arith.constant 3.000000e+00 : f32
    %17 = vector.broadcast %cst_12 : f32 to vector<4x1xf32>
    %18 = arith.addf %16, %17 : vector<4x1xf32>
    %cst_13 = arith.constant 0.000000e+00 : f32
    %cst_14 = arith.constant 6.000000e+00 : f32
    %19 = vector.broadcast %cst_13 : f32 to vector<4x1xf32>
    %20 = arith.maximumf %19, %18 : vector<4x1xf32>
    %21 = vector.broadcast %cst_14 : f32 to vector<4x1xf32>
    %22 = arith.minimumf %21, %20 : vector<4x1xf32>
    %cst_15 = arith.constant 0.166666672 : f32
    %23 = vector.broadcast %cst_15 : f32 to vector<4x1xf32>
    %24 = arith.mulf %22, %23 : vector<4x1xf32>
    %c0_16 = arith.constant 0 : index
    %c0_17 = arith.constant 0 : index
    %25 = vector.load %arg5[%c0_16, %c0_17] : memref<4x256xf32, #tpu.memory_space<vmem>>, vector<4x256xf32>
    %26 = vector.broadcast %24 : vector<4x1xf32> to vector<4x256xf32>
    %27 = arith.mulf %25, %26 : vector<4x256xf32>
    %c0_18 = arith.constant 0 : index
    %c0_19 = arith.constant 0 : index
    %28 = vector.load %arg5[%c0_18, %c0_19] : memref<4x256xf32, #tpu.memory_space<vmem>>, vector<4x256xf32>
    tpu.vector_store %arg5[%c0_18, %c0_19], %27 {strides = array<i32>} : memref<4x256xf32, #tpu.memory_space<vmem>>, vector<4x256xf32>,
    %c1_i32 = arith.constant 1 : i32
    %c0_i32_20 = arith.constant 0 : i32
    %c0_i32_21 = arith.constant 0 : i32
    %29 = tpu.memref_slice %arg4[%arg0, %c0_i32_20, %c0_i32_21] : memref<2x4x256xf32, #tpu.memory_space<any>> -> memref<1x4x256xf32, #tpu.memory_space<any>>
    %30 = tpu.memref_squeeze %29 : memref<1x4x256xf32, #tpu.memory_space<any>> -> memref<4x256xf32, #tpu.memory_space<any>>
    %31 = tpu.memref_slice %arg6[%c1_i32] : memref<2x!tpu.dma_semaphore, #tpu.memory_space<semaphore_mem>> -> memref<1x!tpu.dma_semaphore, #tpu.memory_space<semaphore_mem>>
    %32 = tpu.memref_squeeze %31 : memref<1x!tpu.dma_semaphore, #tpu.memory_space<semaphore_mem>> -> memref<!tpu.dma_semaphore, #tpu.memory_space<semaphore_mem>>
    tpu.enqueue_dma source(%arg5 : memref<4x256xf32, #tpu.memory_space<vmem>>) target(%30 : memref<4x256xf32, #tpu.memory_space<any>>) target_semaphore(%32 : memref<!tpu.dma_semaphore, #tpu.memory_space<semaphore_mem>>)
    %c1_i32_22 = arith.constant 1 : i32
    %c0_i32_23 = arith.constant 0 : i32
    %c0_i32_24 = arith.constant 0 : i32
    %33 = tpu.memref_slice %arg4[%arg0, %c0_i32_23, %c0_i32_24] : memref<2x4x256xf32, #tpu.memory_space<any>> -> memref<1x4x256xf32, #tpu.memory_space<any>>
    %34 = tpu.memref_squeeze %33 : memref<1x4x256xf32, #tpu.memory_space<any>> -> memref<4x256xf32, #tpu.memory_space<any>>
    %35 = tpu.memref_slice %arg6[%c1_i32_22] : memref<2x!tpu.dma_semaphore, #tpu.memory_space<semaphore_mem>> -> memref<1x!tpu.dma_semaphore, #tpu.memory_space<semaphore_mem>>
    %36 = tpu.memref_squeeze %35 : memref<1x!tpu.dma_semaphore, #tpu.memory_space<semaphore_mem>> -> memref<!tpu.dma_semaphore, #tpu.memory_space<semaphore_mem>>
    tpu.wait_dma2 semaphore(%36 : memref<!tpu.dma_semaphore, #tpu.memory_space<semaphore_mem>>) src(%arg5 : memref<4x256xf32, #tpu.memory_space<vmem>>) dst(%34 : memref<4x256xf32, #tpu.memory_space<any>>)
    return
  }
  func.func @transform_1(%arg0: i32) -> (i32, i32) {
    %c0_i32 = arith.constant 0 : i32
    %c0_i32_0 = arith.constant 0 : i32
    %c0_i32_1 = arith.constant 0 : i32
    return %c0_i32, %c0_i32_0 : i32, i32
  }
  func.func @transform_2(%arg0: i32) -> (i32, i32) {
    %c0_i32 = arith.constant 0 : i32
    %c0_i32_0 = arith.constant 0 : i32
    %c0_i32_1 = arith.constant 0 : i32
    return %c0_i32, %c0_i32_0 : i32, i32
  }
}

</mosaic_0001>

<llo_original>
// kernel: tpu_custom_call.1
$region0: #{tpu_custom_call.1}
  #allocation0 [shape = 'u32[]', space=smem, size = 0x4, offset = 0x4, fixed_abs, tag = 'smem constant byte address 0x4 - core index']
  #allocation1 [shape = 'u32[144,128]{1,0:T(1,128)}', space=vmem, size = 0x12000, scoped, tag = 'internal scratch']
  #allocation2 [shape = 'f32[4,256]{1,0:T(4,128)}', space=vmem, size = 0x1000, scoped, tag = 'scratch operand']
  #allocation3 [shape = 's32[2]{0}', space=sflag, size = 0x8, scoped, tag = 'scratch operand']
  #allocation4 [shape = 's32[]', space=sflag, size = 0x4, offset = 0, fixed_abs, tag = 'sflag constant byte address 0x0 - dummy sync flag']
  #allocation5 [shape = 's32[]', space=sflag, size = 0x4, offset = 0, fixed_abs, tag = 'sflag constant byte address 0x0 - dummy sync flag']
  #allocation6 [shape = 'u32[]', space=smem, size = 0x4, offset = 0x44, fixed_abs, tag = 'smem constant byte address 0x44 - assertion arg 0']
  #allocation7 [shape = 'u32[]', space=smem, size = 0x4, offset = 0x48, fixed_abs, tag = 'smem constant byte address 0x48 - assertion arg 1']
  #allocation8 [shape = 's32[]', space=sflag, size = 0x4, offset = 0, fixed_abs, tag = 'sflag constant byte address 0x0 - dummy sync flag']
  #allocation9 [shape = 's32[]', space=sflag, size = 0x4, offset = 0, fixed_abs, tag = 'sflag constant byte address 0x0 - dummy sync flag']
  %s0 = inlined_call_operand.hbm [shape: f32[2,4,256], index: 0, kind: input, shape index: {}]
  %s1 = inlined_call_operand.vmem [shape: f32[4,4], index: 1, kind: input, shape index: {}]
  %s2 = inlined_call_operand.vmem [shape: f32[4,1], index: 2, kind: input, shape index: {}]
  %s3 = inlined_call_operand.hbm [shape: f32[2,4,256], index: 3, kind: output, shape index: {}]
  %s4 = sld [smem:[#allocation0]]
  $region37: #{tpu_custom_call.1} parent=0
    _
  %s6 = ssub.s32 1, %s4
  %s7 = scalar_select 0, %s6, %s4
  loop: start=0, step=1, limit=3
  $region2: #{tpu_custom_call.1} parent=0 // loop_pre_header
    _
  $region3: #{tpu_custom_call.1} parent=0 // loop_header
    %s9 = sphi 0, %s13
    %p10 = scmp.ge.s32.totalorder %s9, 3
    %s16 = sphi 0, %s16
    %s18 = sphi 0, %s16
    %s26 = sphi 0, %s18
    %s30 = sphi 0, %s30
    %s32 = sphi 0, %s30
    %s40 = sphi 0, %s32
  $region4: #{tpu_custom_call.1} parent=0 // loop_header_branch
    %12 = sbr.rel (%p10) target = $region8
  $region5: #{tpu_custom_call.1} parent=0 // loop_body
    %s14 = ssub.s32 %s9, 1
    %s15 = sadd.s32 %s9, 1
    %s17 = sadd.s32 %s16, 1
    %p19 = scmp.eq.s32.totalorder %s9, 1
    %p20 = scmp.ne.s32.totalorder %s16, %s18
    %p21 = scmp.eq.s32.totalorder %s9, 0
    %p22 = por %p20, %p21
    %p23 = scmp.ne.s32.totalorder %s16, %s18
    %p24 = scmp.eq.s32.totalorder %s14, 1
    %p25 = por %p23, %p24
    %p27 = scmp.ne.s32.totalorder %s18, %s26
    %p28 = scmp.eq.s32.totalorder %s14, 0
    %p29 = por %p27, %p28
    %s31 = sadd.s32 %s30, 1
    %p33 = scmp.eq.s32.totalorder %s9, 1
    %p34 = scmp.ne.s32.totalorder %s30, %s32
    %p35 = scmp.eq.s32.totalorder %s9, 0
    %p36 = por %p34, %p35
    %p37 = scmp.ne.s32.totalorder %s30, %s32
    %p38 = scmp.eq.s32.totalorder %s14, 1
    %p39 = por %p37, %p38
    %p41 = scmp.ne.s32.totalorder %s32, %s40
    %p42 = scmp.eq.s32.totalorder %s14, 0
    %p43 = por %p41, %p42
    %p44 = scmp.le.s32.totalorder 1, %s9
    // Predicated region
    $region9: #{tpu_custom_call.1} parent=5 // pred_check
      %p45 = pneg %p44
    $region10: #{tpu_custom_call.1} parent=5 // pred_check_branch
      %47 = sbr.rel (%p45) target = $region12
    $region11: #{tpu_custom_call.1} parent=5 // pred_region
      %s48 = ssub.s32 %s9, 1
      // Predicated region
      $region13: #{tpu_custom_call.1} parent=11 // pred_check
        %p49 = pneg %p29
      $region14: #{tpu_custom_call.1} parent=11 // pred_check_branch
        %51 = sbr.rel (%p49) target = $region16
      $region15: #{tpu_custom_call.1} parent=11 // pred_region
        _
      $region16: #{tpu_custom_call.1} parent=11 // pred_fallthru
        _
      // Predicated region
      $region17: #{tpu_custom_call.1} parent=11 // pred_check
        %p52 = pneg %p43
      $region18: #{tpu_custom_call.1} parent=11 // pred_check_branch
        %54 = sbr.rel (%p52) target = $region20
      $region19: #{tpu_custom_call.1} parent=11 // pred_region
        _
      $region20: #{tpu_custom_call.1} parent=11 // pred_fallthru
        _
    $region12: #{tpu_custom_call.1} parent=5 // pred_fallthru
      _
    %p55 = scmp.lt.s32.totalorder %s9, 2
    // Predicated region
    $region21: #{tpu_custom_call.1} parent=5 // pred_check
      %p56 = pneg %p55
    $region22: #{tpu_custom_call.1} parent=5 // pred_check_branch
      %58 = sbr.rel (%p56) target = $region24
    $region23: #{tpu_custom_call.1} parent=5 // pred_region
      _
    $region24: #{tpu_custom_call.1} parent=5 // pred_fallthru
      _
    %p59 = scmp.le.s32.totalorder 1, %s9
    // Predicated region
    $region25: #{tpu_custom_call.1} parent=5 // pred_check
      %p60 = pneg %p59
    $region26: #{tpu_custom_call.1} parent=5 // pred_check_branch
      %62 = sbr.rel (%p60) target = $region28
    $region27: #{tpu_custom_call.1} parent=5 // pred_region
      %s63 = ssub.s32 %s9, 1
      %p64 = pneg %p29
      %p65 = pneg %p25
      %p66 = pneg %p43
      %p67 = pneg %p39
      %s68 = smul.u32 %s14, 2
      %s69 = smul.addr %s68, 64
      %s70 = scalar_lea.hbm %s0, %s69
      // Predicated region
      $region29: #{tpu_custom_call.1} parent=27 // pred_check
        _
      $region30: #{tpu_custom_call.1} parent=27 // pred_check_branch
        %72 = sbr.rel target = $region32
      $region31: #{tpu_custom_call.1} parent=27 // pred_region
        %73 = sst [smem:[#allocation6]] [#allocation5]
        %74 = sst [smem:[#allocation7]] [#allocation4]
      $region32: #{tpu_custom_call.1} parent=27 // pred_fallthru
        _
      %76 = shalt.err (0)
      %s78 = sshll.u32 [#allocation2], 4
      %s79 = int_to_ptr.vmem [resolvable:$true] %s78
      %81 = dma.hbm_to_vmem [thread:$0]  %s70, 128, %s79, [#allocation3]
      %s82 = smul.u32 4, 1
      %s83 = smul.u32 %s82, 2
      %s84 = sshll.u32 %s83, 4
      %85 = dma.done [#allocation3], %s84
      %v86 = vld [vmem:[#allocation2] sm:$0xff]
      %v88 = vcombine.high %v86, %v86
      %vm90 = vcmask 1043456
      %v91 = vsel %vm90, %v86, 0.0
      %v92 = vsel %vm90, %v88, 0.0
      %v93 = vadd.f32 %v91, %v92
      %94 = vadd.xlane.f32.xlu0 %v93
      %v95 = vpop.xlane.xlu0 %94
      %v96 = vmul.f32 %v95, 0.00390625
      %v97 = vld [vmem:[%s1] sm:$0xf]
      %v98 = vld [vmem:[%s2] sm:$0xf]
      %vm99 = vcmask 31744
      %v101 = vsel %vm99, %v97, 0
      %v104 = vsel %vm90, %v96, 0
      %106 = vmatprep.subr.mxu0 0.0
      %107 = vmatpush1.msra.mxu0 %v104
      %108 = vmatprep.subr.mxu0 0.0
      %109 = vmatpush1.msra.mxu0 0.0
      %110 = vmatprep.subr.mxu0 0.0
      %111 = vmatpush1.msra.mxu0 0.0
      %112 = vmatprep.subr.mxu0 0.0
      %113 = vmatpush1.msra.mxu0 0.0
      %114 = vmatprep.subr.mxu0 0.0
      %115 = vmatpush1.msra.mxu0 0.0
      %116 = vmatprep.subr.mxu0 0.0
      %117 = vmatpush1.msra.mxu0 0.0
      %118 = vmatprep.subr.mxu0 0.0
      %119 = vmatpush1.msra.mxu0 0.0
      %120 = vmatprep.subr.mxu0 0.0
      %121 = vmatpush1.msra.mxu0 0.0
      %122 = vmatprep.subr.mxu0 0.0
      %123 = vmatpush1.msra.mxu0 0.0
      %124 = vmatprep.subr.mxu0 0.0
      %125 = vmatpush1.msra.mxu0 0.0
      %126 = vmatprep.subr.mxu0 0.0
      %127 = vmatpush1.msra.mxu0 0.0
      %128 = vmatprep.subr.mxu0 0.0
      %129 = vmatpush1.msra.mxu0 0.0
      %130 = vmatprep.subr.mxu0 0.0
      %131 = vmatpush1.msra.mxu0 0.0
      %132 = vmatprep.subr.mxu0 0.0
      %133 = vmatpush1.msra.mxu0 0.0
      %134 = vmatprep.subr.mxu0 0.0
      %135 = vmatpush1.msra.mxu0 0.0
      %136 = vmatprep.subr.mxu0 0.0
      %137 = vmatpush1.msra.mxu0 0.0
      %138 = vmatprep.subr.mxu0 0.0
      %139 = vmatpush1.msra.mxu0 0.0
      %140 = vmatprep.subr.mxu0 0.0
      %141 = vmatpush1.msra.mxu0 0.0
      %142 = vmatprep.subr.mxu0 0.0
      %143 = vmatpush1.msra.mxu0 0.0
      %144 = vmatprep.subr.mxu0 0.0
      %145 = vmatpush1.msra.mxu0 0.0
      %146 = vmatprep.subr.mxu0 0.0
      %147 = vmatpush1.msra.mxu0 0.0
      %148 = vmatprep.subr.mxu0 0.0
      %149 = vmatpush1.msra.mxu0 0.0
      %150 = vmatprep.subr.mxu0 0.0
      %151 = vmatpush1.msra.mxu0 0.0
      %152 = vmatprep.subr.mxu0 0.0
      %153 = vmatpush1.msra.mxu0 0.0
      %154 = vmatprep.subr.mxu0 0.0
      %155 = vmatpush1.msra.mxu0 0.0
      %156 = vmatprep.subr.mxu0 0.0
      %157 = vmatpush1.msra.mxu0 0.0
      %158 = vmatprep.subr.mxu0 0.0
      %159 = vmatpush1.msra.mxu0 0.0
      %160 = vmatprep.subr.mxu0 0.0
      %161 = vmatpush1.msra.mxu0 0.0
      %162 = vmatprep.subr.mxu0 0.0
      %163 = vmatpush1.msra.mxu0 0.0
      %164 = vmatprep.subr.mxu0 0.0
      %165 = vmatpush1.msra.mxu0 0.0
      %166 = vmatprep.subr.mxu0 0.0
      %167 = vmatpush1.msra.mxu0 0.0
      %168 = vmatprep.subr.mxu0 0.0
      %169 = vmatpush1.msra.mxu0 0.0
      %170 = vmatprep.mubr.f32.mxu0 0.0
      %171 = vmatmul.mubr.f32.gmra.mrb[0].mxu0 %v101
      %v172 = vpop.f32.mrb[0].mxu0
      %v173 = vadd.f32 %v98, %v172
      %v174 = vpop.f32.mrb[0].mxu0
      %175 = vdwg.mxu0
      %v176 = vadd.f32 %v173, 3.0
      %v177 = vmax.f32 %v176, 0.0
      %v178 = vmin.f32 %v177, 6.0
      %v179 = vmul.f32 %v178, 0.16666667
      %181 = vset.pattern.permute.xlu0 0
      %182 = vperm.xlu0 %181, %v179
      %v183 = vpop.permute.xlu0 %182
      %v185 = vunpack.c.l.s4 839922192
      %v186 = vunpack.c.0.s8 %v185
      %v187 = vlaneseq
      %v188 = vshrl.u32 %v187, 7
      %v189 = vsub.s32 %v186, %v188
      %v190 = vrot.slane %v183, %v189
      %v192 = vmul.f32 %v86, %v190
      %193 = vst [vmem:[#allocation2] sm:$0xff] %v192
      %s194 = smul.addr %s68, 64
      %s195 = scalar_lea.hbm %s3, %s194
      %s196 = scalar_lea.sflag [#allocation3], 1
      // Predicated region
      $region33: #{tpu_custom_call.1} parent=27 // pred_check
        _
      $region34: #{tpu_custom_call.1} parent=27 // pred_check_branch
        %198 = sbr.rel target = $region36
      $region35: #{tpu_custom_call.1} parent=27 // pred_region
        %199 = sst [smem:[#allocation6]] [#allocation9]
        %200 = sst [smem:[#allocation7]] [#allocation8]
      $region36: #{tpu_custom_call.1} parent=27 // pred_fallthru
        _
      %202 = shalt.err (0)
      %s204 = sshll.u32 [#allocation2], 4
      %s205 = int_to_ptr.vmem [resolvable:$true] %s204
      %207 = dma.vmem_to_hbm [thread:$0]  %s205, 128, %s195, %s196
      %s208 = sshll.u32 %s83, 4
      %209 = dma.done %s196, %s208
    $region28: #{tpu_custom_call.1} parent=5 // pred_fallthru
      _
  $region6: #{tpu_custom_call.1} parent=0 // loop_footer
    %s13 = sadd.s32 1, %s9
  $region7: #{tpu_custom_call.1} parent=0 // loop_footer_branch
    %8 = sbr.rel target = $region3
  $region8: #{tpu_custom_call.1} parent=0 // loop_exit
    _
  %210 = vsyncmov [#allocation3]
  %s211 = vpop.sfrf %210
  %p212 = scmp.eq.s32.totalorder %s211, 0
  %p213 = pneg %p212
  %215 = shalt.err (%p213)
  %s216 = scalar_lea.sflag [#allocation3], 1
  %217 = vsyncmov %s216
  %s218 = vpop.sfrf %217
  %p219 = scmp.eq.s32.totalorder %s218, 0
  %p220 = pneg %p219
  %222 = shalt.err (%p220)

</llo_original>
